<compile_context>
chip_gen: v5e
topology: v5e:2x2
jax: 0.10.0
libtpu: 0.0.40
codegen_flags: <defaults>
</compile_context>

<pallas_src>
import functools

import jax
import jax.numpy as jnp
from jax.experimental import pallas as pl
from jax.experimental.pallas import tpu as pltpu

O_DIM = 24
HDIMS = (64, 64)
A_DIM = 8
LANE = 128             # padded output width of every layer -> lane-dense stores
DEFAULT_BLOCK_B = 256  # batch tile (rows per grid step); multiple of 8


# ---------------------------------------------------------------------------
# Kernel
# ---------------------------------------------------------------------------
def mlp_kernel(x_ref, w1_ref, b1_ref, w2_ref, b2_ref, w3_ref, b3_ref, o_ref):
    # Layer 1: (TB, 24) bf16 @ (24, 128) bf16 -> f32 acc; bias + ReLU in f32.
    h = jnp.dot(x_ref[...], w1_ref[...], preferred_element_type=jnp.float32)
    h = jnp.maximum(h + b1_ref[...], 0.0)
    # Layer 2: (TB, 128) @ (128, 128) (zero-padded rows/cols contribute 0).
    h = jnp.dot(h.astype(w2_ref.dtype), w2_ref[...],
                preferred_element_type=jnp.float32)
    h = jnp.maximum(h + b2_ref[...], 0.0)
    # Output layer + output activation (the module applies ReLU once more).
    h = jnp.dot(h.astype(w3_ref.dtype), w3_ref[...],
                preferred_element_type=jnp.float32)
    h = jnp.maximum(h + b3_ref[...], 0.0)
    o_ref[...] = h.astype(o_ref.dtype)   # unmasked (TB, 128) f32 store


# ---------------------------------------------------------------------------
# Parameter packing (torch layout -> kernel layout)
# ---------------------------------------------------------------------------
def pack_params(params_f32):
    """Transpose (out,in)->(in,out), zero-pad widths to LANE, cast W to bf16."""
    packed = {}
    for i in (1, 2, 3):
        w = params_f32[f"w{i}"]            # (out, in) torch layout
        b = params_f32[f"b{i}"]            # (out,)
        wt = jnp.transpose(w)              # (in, out)
        in_dim, out_dim = wt.shape
        # Layers 2/3 consume the previous layer's 128-wide (zero-padded) output,
        # so their K dim must also be padded to LANE with zero rows.
        in_pad = O_DIM if i == 1 else LANE
        wt = jnp.pad(wt, ((0, in_pad - in_dim), (0, LANE - out_dim)))
        bp = jnp.pad(b, (0, LANE - out_dim)).reshape(1, LANE)
        packed[f"w{i}"] = wt.astype(jnp.bfloat16)
        packed[f"b{i}"] = bp.astype(jnp.float32)
    return packed


# ---------------------------------------------------------------------------
# Wrapper
# ---------------------------------------------------------------------------
@functools.partial(jax.jit, static_argnames=("block_b",))
def mlp_forward(x, packed, *, block_b=DEFAULT_BLOCK_B):
    """x: (B, O_DIM) float32. packed: output of pack_params. Returns (B, A_DIM) f32."""
    B = x.shape[0]
    # Shrink the tile for tiny batches instead of padding up to block_b.
    tb = min(block_b, max(8, ((B + 7) // 8) * 8))
    b_pad = pl.cdiv(B, tb) * tb

    xb = x.astype(jnp.bfloat16)
    if b_pad != B:
        xb = jnp.pad(xb, ((0, b_pad - B), (0, 0)))

    w1, b1 = packed["w1"], packed["b1"]
    w2, b2 = packed["w2"], packed["b2"]
    w3, b3 = packed["w3"], packed["b3"]

    # Weights / biases: whole array as one block, constant index map ->
    # DMA'd once, resident in VMEM across all batch tiles.
    def resident(arr):
        return pl.BlockSpec(arr.shape, lambda i: (0, 0))

    out = pl.pallas_call(
        mlp_kernel,
        out_shape=jax.ShapeDtypeStruct((b_pad, LANE), jnp.float32),
        grid=(b_pad // tb,),
        in_specs=[
            pl.BlockSpec((tb, O_DIM), lambda i: (i, 0)),   # x tiles stream
            resident(w1), resident(b1),
            resident(w2), resident(b2),
            resident(w3), resident(b3),
        ],
        out_specs=pl.BlockSpec((tb, LANE), lambda i: (i, 0)),
        compiler_params=pltpu.CompilerParams(
            dimension_semantics=("parallel",),   # split batch tiles across TCs (v7x)
        ),
    )(xb, w1, b1, w2, b2, w3, b3)

    return out[:B, :A_DIM]


# ---------------------------------------------------------------------------
# Init + references
# ---------------------------------------------------------------------------
def init_params(key, o_dim=O_DIM, hdims=HDIMS, a_dim=A_DIM):
    """Mirror the PyTorch module: weight trunc_normal_(std=0.1) (bounds [-2,2]
    are +/-20 sigma, i.e. effectively a plain normal), bias U(-1/sqrt(fan_in), ...)."""
    params = {}
    prev = o_dim
    for i, h in enumerate(list(hdims) + [a_dim], start=1):
        key, kw, kb = jax.random.split(key, 3)
        w = 0.1 * jax.random.truncated_normal(
            kw, lower=-20.0, upper=20.0, shape=(h, prev), dtype=jnp.float32)
        bound = 1.0 / float(jnp.sqrt(jnp.float32(prev)))
        b = jax.random.uniform(kb, (h,), jnp.float32, -bound, bound)
        params[f"w{i}"] = w   # torch layout (out, in)
        params[f"b{i}"] = b
        prev = h
    return params


def reference_forward_f32(x, params):
    h = jnp.maximum(x @ params["w1"].T + params["b1"], 0.0)
    h = jnp.maximum(h @ params["w2"].T + params["b2"], 0.0)
    return jnp.maximum(h @ params["w3"].T + params["b3"], 0.0)


def reference_forward_matched(x, params):
    """Same bf16 rounding points as the kernel, f32 accumulation."""
    bf = lambda a: a.astype(jnp.bfloat16).astype(jnp.float32)
    h = jnp.maximum(bf(x) @ bf(params["w1"].T) + params["b1"], 0.0)
    h = jnp.maximum(bf(h) @ bf(params["w2"].T) + params["b2"], 0.0)
    return jnp.maximum(bf(h) @ bf(params["w3"].T) + params["b3"], 0.0)


# ---------------------------------------------------------------------------
# Demo / self-check
# ---------------------------------------------------------------------------
if __name__ == "__main__":
    key = jax.random.PRNGKey(0)
    key, kx_small, kx_large = jax.random.split(key, 3)

    params = init_params(key)
    packed = pack_params(params)

    # Small batch (exercises tile-shrink + tail padding) and a multi-tile batch.
    for B, kx in ((2, kx_small), (1000, kx_large)):
        x = jax.random.normal(kx, (B, O_DIM), dtype=jnp.float32)
        out = jax.block_until_ready(mlp_forward(x, packed))
        assert out.shape == (B, A_DIM), out.shape

        ref_matched = reference_forward_matched(x, params)
        ref_f32 = reference_forward_f32(x, params)
        assert jnp.allclose(out, ref_matched, atol=1e-3, rtol=1e-3), (
            float(jnp.max(jnp.abs(out - ref_matched))))
        assert jnp.allclose(out, ref_f32, atol=5e-2, rtol=5e-2), (
            float(jnp.max(jnp.abs(out - ref_f32))))

    print("KERNEL_OK")
</pallas_src>

<mosaic_0001>
module attributes {stable_mosaic.version = 11 : i64} {
  func.func @mlp_kernel(%arg0: i32, %arg1: memref<8x24xbf16, #tpu.memory_space<vmem>>, %arg2: memref<24x128xbf16, #tpu.memory_space<vmem>>, %arg3: memref<1x128xf32, #tpu.memory_space<vmem>>, %arg4: memref<128x128xbf16, #tpu.memory_space<vmem>>, %arg5: memref<1x128xf32, #tpu.memory_space<vmem>>, %arg6: memref<128x128xbf16, #tpu.memory_space<vmem>>, %arg7: memref<1x128xf32, #tpu.memory_space<vmem>>, %arg8: memref<8x128xf32, #tpu.memory_space<vmem>>) attributes {dimension_semantics = [#tpu.dimension_semantics<parallel>], iteration_bounds = array<i64: 1>, scalar_prefetch = 0 : i64, scratch_operands = 0 : i64, tpu.core_type = #tpu.core_type<tc>, window_params = [{transform_indices = @transform_0, window_bounds = array<i64: 8, 24>}, {pipeline_mode = #tpu.pipeline_mode<synchronous>, transform_indices = @transform_1, window_bounds = array<i64: 24, 128>}, {pipeline_mode = #tpu.pipeline_mode<synchronous>, transform_indices = @transform_2, window_bounds = array<i64: 1, 128>}, {pipeline_mode = #tpu.pipeline_mode<synchronous>, transform_indices = @transform_3, window_bounds = array<i64: 128, 128>}, {pipeline_mode = #tpu.pipeline_mode<synchronous>, transform_indices = @transform_4, window_bounds = array<i64: 1, 128>}, {pipeline_mode = #tpu.pipeline_mode<synchronous>, transform_indices = @transform_5, window_bounds = array<i64: 128, 128>}, {pipeline_mode = #tpu.pipeline_mode<synchronous>, transform_indices = @transform_6, window_bounds = array<i64: 1, 128>}, {transform_indices = @transform_7, window_bounds = array<i64: 8, 128>}]} {
    %c0 = arith.constant 0 : index
    %c0_0 = arith.constant 0 : index
    %0 = vector.load %arg1[%c0, %c0_0] : memref<8x24xbf16, #tpu.memory_space<vmem>>, vector<8x24xbf16>
    %c0_1 = arith.constant 0 : index
    %c0_2 = arith.constant 0 : index
    %1 = vector.load %arg2[%c0_1, %c0_2] : memref<24x128xbf16, #tpu.memory_space<vmem>>, vector<24x128xbf16>
    %cst = arith.constant dense<0.000000e+00> : vector<8x128xf32>
    %2 = tpu.matmul %0, %1, %cst {dimension_numbers = #tpu.dot_dimension_numbers<[1], [0], [0], [1], [0, 0, 1, 1], [], []>} : vector<8x24xbf16>, vector<24x128xbf16>, vector<8x128xf32> -> vector<8x128xf32>
    %c0_3 = arith.constant 0 : index
    %c0_4 = arith.constant 0 : index
    %3 = vector.load %arg3[%c0_3, %c0_4] : memref<1x128xf32, #tpu.memory_space<vmem>>, vector<1x128xf32>
    %4 = vector.broadcast %3 : vector<1x128xf32> to vector<8x128xf32>
    %5 = arith.addf %2, %4 : vector<8x128xf32>
    %cst_5 = arith.constant 0.000000e+00 : f32
    %6 = vector.broadcast %cst_5 : f32 to vector<8x128xf32>
    %7 = arith.maximumf %5, %6 : vector<8x128xf32>
    %8 = arith.truncf %7 : vector<8x128xf32> to vector<8x128xbf16>
    %c0_6 = arith.constant 0 : index
    %c0_7 = arith.constant 0 : index
    %9 = vector.load %arg4[%c0_6, %c0_7] : memref<128x128xbf16, #tpu.memory_space<vmem>>, vector<128x128xbf16>
    %cst_8 = arith.constant dense<0.000000e+00> : vector<8x128xf32>
    %10 = tpu.matmul %8, %9, %cst_8 {dimension_numbers = #tpu.dot_dimension_numbers<[1], [0], [0], [1], [0, 0, 1, 1], [], []>} : vector<8x128xbf16>, vector<128x128xbf16>, vector<8x128xf32> -> vector<8x128xf32>
    %c0_9 = arith.constant 0 : index
    %c0_10 = arith.constant 0 : index
    %11 = vector.load %arg5[%c0_9, %c0_10] : memref<1x128xf32, #tpu.memory_space<vmem>>, vector<1x128xf32>
    %12 = vector.broadcast %11 : vector<1x128xf32> to vector<8x128xf32>
    %13 = arith.addf %10, %12 : vector<8x128xf32>
    %cst_11 = arith.constant 0.000000e+00 : f32
    %14 = vector.broadcast %cst_11 : f32 to vector<8x128xf32>
    %15 = arith.maximumf %13, %14 : vector<8x128xf32>
    %16 = arith.truncf %15 : vector<8x128xf32> to vector<8x128xbf16>
    %c0_12 = arith.constant 0 : index
    %c0_13 = arith.constant 0 : index
    %17 = vector.load %arg6[%c0_12, %c0_13] : memref<128x128xbf16, #tpu.memory_space<vmem>>, vector<128x128xbf16>
    %cst_14 = arith.constant dense<0.000000e+00> : vector<8x128xf32>
    %18 = tpu.matmul %16, %17, %cst_14 {dimension_numbers = #tpu.dot_dimension_numbers<[1], [0], [0], [1], [0, 0, 1, 1], [], []>} : vector<8x128xbf16>, vector<128x128xbf16>, vector<8x128xf32> -> vector<8x128xf32>
    %c0_15 = arith.constant 0 : index
    %c0_16 = arith.constant 0 : index
    %19 = vector.load %arg7[%c0_15, %c0_16] : memref<1x128xf32, #tpu.memory_space<vmem>>, vector<1x128xf32>
    %20 = vector.broadcast %19 : vector<1x128xf32> to vector<8x128xf32>
    %21 = arith.addf %18, %20 : vector<8x128xf32>
    %cst_17 = arith.constant 0.000000e+00 : f32
    %22 = vector.broadcast %cst_17 : f32 to vector<8x128xf32>
    %23 = arith.maximumf %21, %22 : vector<8x128xf32>
    %c0_18 = arith.constant 0 : index
    %c0_19 = arith.constant 0 : index
    %24 = vector.load %arg8[%c0_18, %c0_19] : memref<8x128xf32, #tpu.memory_space<vmem>>, vector<8x128xf32>
    tpu.vector_store %arg8[%c0_18, %c0_19], %23 {strides = array<i32>} : memref<8x128xf32, #tpu.memory_space<vmem>>, vector<8x128xf32>,
    return
  }
  func.func @transform_0(%arg0: i32) -> (i32, i32) {
    %c0_i32 = arith.constant 0 : i32
    %c0_i32_0 = arith.constant 0 : i32
    return %arg0, %c0_i32 : i32, i32
  }
  func.func @transform_1(%arg0: i32) -> (i32, i32) {
    %c0_i32 = arith.constant 0 : i32
    %c0_i32_0 = arith.constant 0 : i32
    %c0_i32_1 = arith.constant 0 : i32
    return %c0_i32, %c0_i32_0 : i32, i32
  }
  func.func @transform_2(%arg0: i32) -> (i32, i32) {
    %c0_i32 = arith.constant 0 : i32
    %c0_i32_0 = arith.constant 0 : i32
    %c0_i32_1 = arith.constant 0 : i32
    return %c0_i32, %c0_i32_0 : i32, i32
  }
  func.func @transform_3(%arg0: i32) -> (i32, i32) {
    %c0_i32 = arith.constant 0 : i32
    %c0_i32_0 = arith.constant 0 : i32
    %c0_i32_1 = arith.constant 0 : i32
    return %c0_i32, %c0_i32_0 : i32, i32
  }
  func.func @transform_4(%arg0: i32) -> (i32, i32) {
    %c0_i32 = arith.constant 0 : i32
    %c0_i32_0 = arith.constant 0 : i32
    %c0_i32_1 = arith.constant 0 : i32
    return %c0_i32, %c0_i32_0 : i32, i32
  }
  func.func @transform_5(%arg0: i32) -> (i32, i32) {
    %c0_i32 = arith.constant 0 : i32
    %c0_i32_0 = arith.constant 0 : i32
    %c0_i32_1 = arith.constant 0 : i32
    return %c0_i32, %c0_i32_0 : i32, i32
  }
  func.func @transform_6(%arg0: i32) -> (i32, i32) {
    %c0_i32 = arith.constant 0 : i32
    %c0_i32_0 = arith.constant 0 : i32
    %c0_i32_1 = arith.constant 0 : i32
    return %c0_i32, %c0_i32_0 : i32, i32
  }
  func.func @transform_7(%arg0: i32) -> (i32, i32) {
    %c0_i32 = arith.constant 0 : i32
    %c0_i32_0 = arith.constant 0 : i32
    return %arg0, %c0_i32 : i32, i32
  }
}

</mosaic_0001>

<llo_original>
// kernel: mlp_forward.1
$region0: #{mlp_forward.1}
  #allocation0 [shape = 'u32[]', space=smem, size = 0x4, offset = 0x4, fixed_abs, tag = 'smem constant byte address 0x4 - core index']
  #allocation1 [shape = 'u32[72,128]{1,0:T(1,128)}', space=vmem, size = 0x9000, scoped, tag = 'internal scratch']
  %s0 = inlined_call_operand.vmem [shape: bf16[8,24], index: 0, kind: input, shape index: {}]
  %s1 = inlined_call_operand.vmem [shape: bf16[24,128], index: 1, kind: input, shape index: {}]
  %s2 = inlined_call_operand.hbm [shape: f32[1,128], index: 2, kind: input, shape index: {}]
  %s3 = inlined_call_operand.hbm [shape: bf16[128,128], index: 3, kind: input, shape index: {}]
  %s4 = inlined_call_operand.hbm [shape: f32[1,128], index: 4, kind: input, shape index: {}]
  %s5 = inlined_call_operand.hbm [shape: bf16[128,128], index: 5, kind: input, shape index: {}]
  %s6 = inlined_call_operand.hbm [shape: f32[1,128], index: 6, kind: input, shape index: {}]
  %s7 = inlined_call_operand.vmem [shape: f32[8,128], index: 7, kind: output, shape index: {}]
  %s8 = sld [smem:[#allocation0]]
  $region58: #{mlp_forward.1} parent=0
    _
  %s10 = ssub.s32 1, %s8
  %s11 = scalar_select 0, %s10, %s8
  $region1: #{mlp_forward.1} parent=0
    #allocation2 [shape = 'u8[512]{0}', space=vmem, size = 0x400, scoped, tag = 'input window, operand 2, single buffered']
    #allocation3 [shape = 's32[1]{0}', space=sflag, size = 0x4, scoped, tag = 'scoped memory for mlp_forward.1']
    #allocation4 [shape = 'u8[32768]{0}', space=vmem, size = 0x8000, scoped, tag = 'input window, operand 3, single buffered']
    #allocation5 [shape = 's32[1]{0}', space=sflag, size = 0x4, scoped, tag = 'scoped memory for mlp_forward.1']
    #allocation6 [shape = 'u8[512]{0}', space=vmem, size = 0x400, scoped, tag = 'input window, operand 4, single buffered']
    #allocation7 [shape = 'u8[32768]{0}', space=vmem, size = 0x8000, scoped, tag = 'input window, operand 5, single buffered']
    #allocation8 [shape = 's32[1]{0}', space=sflag, size = 0x4, scoped, tag = 'scoped memory for mlp_forward.1']
    #allocation9 [shape = 'u8[512]{0}', space=vmem, size = 0x400, scoped, tag = 'input window, operand 6, single buffered']
    %12 = vsyncpa [#allocation3], 0
    %13 = vsyncpa [#allocation5], 0
    %14 = vsyncpa [#allocation8], 0
    // Predicated region
    $region2: #{mlp_forward.1} parent=1 // pred_check
      _
    $region3: #{mlp_forward.1} parent=1 // pred_check_branch
      %16 = sbr.rel (0) target = $region5
    $region4: #{mlp_forward.1} parent=1 // pred_region
      _
    $region5: #{mlp_forward.1} parent=1 // pred_fallthru
      _
    // Predicated region
    $region6: #{mlp_forward.1} parent=1 // pred_check
      _
    $region7: #{mlp_forward.1} parent=1 // pred_check_branch
      %18 = sbr.rel (0) target = $region9
    $region8: #{mlp_forward.1} parent=1 // pred_region
      _
    $region9: #{mlp_forward.1} parent=1 // pred_fallthru
      _
    // Predicated region
    $region10: #{mlp_forward.1} parent=1 // pred_check
      _
    $region11: #{mlp_forward.1} parent=1 // pred_check_branch
      %20 = sbr.rel (0) target = $region13
    $region12: #{mlp_forward.1} parent=1 // pred_region
      %22 = vsyncadd [#allocation3], 0
      %s24 = sshll.u32 %s2, 4
      %s25 = int_to_ptr.hbm [resolvable:$true] %s24
      %s26 = sshll.u32 [#allocation2], 4
      %s27 = int_to_ptr.vmem [resolvable:$true] %s26
      %29 = dma.hbm_to_vmem [thread:$0]  %s25, 16, %s27, [#allocation3]
    $region13: #{mlp_forward.1} parent=1 // pred_fallthru
      _
    // Predicated region
    $region14: #{mlp_forward.1} parent=1 // pred_check
      _
    $region15: #{mlp_forward.1} parent=1 // pred_check_branch
      %31 = sbr.rel (0) target = $region17
    $region16: #{mlp_forward.1} parent=1 // pred_region
      %33 = vsyncadd [#allocation5], 0
      %s34 = sshll.u32 %s3, 4
      %s35 = int_to_ptr.hbm [resolvable:$true] %s34
      %s36 = sshll.u32 [#allocation4], 4
      %s37 = int_to_ptr.vmem [resolvable:$true] %s36
      %42 = dma.hbm_to_vmem [thread:$0]  %s35, 1024, %s37, [#allocation5], 64, 64, 4
    $region17: #{mlp_forward.1} parent=1 // pred_fallthru
      _
    // Predicated region
    $region18: #{mlp_forward.1} parent=1 // pred_check
      _
    $region19: #{mlp_forward.1} parent=1 // pred_check_branch
      %44 = sbr.rel (0) target = $region21
    $region20: #{mlp_forward.1} parent=1 // pred_region
      %46 = vsyncadd [#allocation5], 0
      %s48 = sshll.u32 %s4, 4
      %s49 = int_to_ptr.hbm [resolvable:$true] %s48
      %s50 = sshll.u32 [#allocation6], 4
      %s51 = int_to_ptr.vmem [resolvable:$true] %s50
      %53 = dma.hbm_to_vmem [thread:$0]  %s49, 16, %s51, [#allocation5]
    $region21: #{mlp_forward.1} parent=1 // pred_fallthru
      _
    // Predicated region
    $region22: #{mlp_forward.1} parent=1 // pred_check
      _
    $region23: #{mlp_forward.1} parent=1 // pred_check_branch
      %55 = sbr.rel (0) target = $region25
    $region24: #{mlp_forward.1} parent=1 // pred_region
      %57 = vsyncadd [#allocation8], 0
      %s58 = sshll.u32 %s5, 4
      %s59 = int_to_ptr.hbm [resolvable:$true] %s58
      %s60 = sshll.u32 [#allocation7], 4
      %s61 = int_to_ptr.vmem [resolvable:$true] %s60
      %66 = dma.hbm_to_vmem [thread:$0]  %s59, 1024, %s61, [#allocation8], 64, 64, 4
    $region25: #{mlp_forward.1} parent=1 // pred_fallthru
      _
    // Predicated region
    $region26: #{mlp_forward.1} parent=1 // pred_check
      _
    $region27: #{mlp_forward.1} parent=1 // pred_check_branch
      %68 = sbr.rel (0) target = $region29
    $region28: #{mlp_forward.1} parent=1 // pred_region
      %70 = vsyncadd [#allocation8], 0
      %s72 = sshll.u32 %s6, 4
      %s73 = int_to_ptr.hbm [resolvable:$true] %s72
      %s74 = sshll.u32 [#allocation9], 4
      %s75 = int_to_ptr.vmem [resolvable:$true] %s74
      %77 = dma.hbm_to_vmem [thread:$0]  %s73, 16, %s75, [#allocation8]
    $region29: #{mlp_forward.1} parent=1 // pred_fallthru
      _
    // Predicated region
    $region30: #{mlp_forward.1} parent=1 // pred_check
      _
    $region31: #{mlp_forward.1} parent=1 // pred_check_branch
      %79 = sbr.rel (0) target = $region33
    $region32: #{mlp_forward.1} parent=1 // pred_region
      %81 = dma.done [#allocation3], 16
    $region33: #{mlp_forward.1} parent=1 // pred_fallthru
      _
    // Predicated region
    $region34: #{mlp_forward.1} parent=1 // pred_check
      _
    $region35: #{mlp_forward.1} parent=1 // pred_check_branch
      %83 = sbr.rel (0) target = $region37
    $region36: #{mlp_forward.1} parent=1 // pred_region
      %85 = dma.done [#allocation5], 1024
    $region37: #{mlp_forward.1} parent=1 // pred_fallthru
      _
    // Predicated region
    $region38: #{mlp_forward.1} parent=1 // pred_check
      _
    $region39: #{mlp_forward.1} parent=1 // pred_check_branch
      %87 = sbr.rel (0) target = $region41
    $region40: #{mlp_forward.1} parent=1 // pred_region
      %89 = dma.done [#allocation5], 16
    $region41: #{mlp_forward.1} parent=1 // pred_fallthru
      _
    // Predicated region
    $region42: #{mlp_forward.1} parent=1 // pred_check
      _
    $region43: #{mlp_forward.1} parent=1 // pred_check_branch
      %91 = sbr.rel (0) target = $region45
    $region44: #{mlp_forward.1} parent=1 // pred_region
      %93 = dma.done [#allocation8], 1024
    $region45: #{mlp_forward.1} parent=1 // pred_fallthru
      _
    // Predicated region
    $region46: #{mlp_forward.1} parent=1 // pred_check
      _
    $region47: #{mlp_forward.1} parent=1 // pred_check_branch
      %95 = sbr.rel (0) target = $region49
    $region48: #{mlp_forward.1} parent=1 // pred_region
      %97 = dma.done [#allocation8], 16
    $region49: #{mlp_forward.1} parent=1 // pred_fallthru
      _
    %v99 = vld [vmem:[%s0] sm:$0xf]
    %v100 = vld [vmem:[%s1] sm:$0xf]
    %v101 = vld [vmem:[%s1 + $0x4] sm:$0xf]
    %v102 = vld [vmem:[%s1 + $0x8] sm:$0xf]
    %v103 = vld [vmem:[#allocation2] sm:$0x1]
    %v105 = vperm.slane %v103, 0
    %v110 = vunpack.c.l.b16 %v100
    %v111 = vunpack.c.l.b16 %v101
    %v112 = vunpack.c.l.b16 %v102
    %v113 = vpack.c.b16 %v111, %v110
    %v114 = vpack.c.b16 %v112, %v112
    %vm116 = vcmask 195584
    %v118 = vsel %vm116, %v99, 0
    %vm120 = vcmask 1043456
    %v122 = vsel %vm120, %v114, 0
    %124 = vmatpush.bf16.msra.mxu0 0
    %125 = vmatpush.bf16.msra.mxu0 0
    %126 = vmatpush.bf16.msra.mxu0 0
    %127 = vmatpush.bf16.msra.mxu0 0
    %128 = vmatpush.bf16.msra.mxu0 0
    %129 = vmatpush.bf16.msra.mxu0 0
    %130 = vmatpush.bf16.msra.mxu0 %v122
    %131 = vmatpush.bf16.msra.mxu0 %v113
    %132 = vmatmul.bf16.gmra.mxu0 %v118
    %v133 = vpop.f32.mrf.mxu0
    %v134 = vadd.f32 %v105, %v133
    %v135 = vpop.f32.mrf.mxu0
    %136 = vdwg.mxu0
    %v137 = vmax.f32 %v134, 0.0
    %v138 = vpack.c.bf16 %v137, %v137
    %v139 = vld [vmem:[#allocation4] sm:$0xf]
    %v140 = vld [vmem:[#allocation4 + $0x4] sm:$0xf]
    %v141 = vld [vmem:[#allocation4 + $0x8] sm:$0xf]
    %v142 = vld [vmem:[#allocation4 + $0xc] sm:$0xf]
    %v143 = vld [vmem:[#allocation4 + $0x10] sm:$0xf]
    %v144 = vld [vmem:[#allocation4 + $0x14] sm:$0xf]
    %v145 = vld [vmem:[#allocation4 + $0x18] sm:$0xf]
    %v146 = vld [vmem:[#allocation4 + $0x1c] sm:$0xf]
    %v147 = vld [vmem:[#allocation4 + $0x20] sm:$0xf]
    %v148 = vld [vmem:[#allocation4 + $0x24] sm:$0xf]
    %v149 = vld [vmem:[#allocation4 + $0x28] sm:$0xf]
    %v150 = vld [vmem:[#allocation4 + $0x2c] sm:$0xf]
    %v151 = vld [vmem:[#allocation4 + $0x30] sm:$0xf]
    %v152 = vld [vmem:[#allocation4 + $0x34] sm:$0xf]
    %v153 = vld [vmem:[#allocation4 + $0x38] sm:$0xf]
    %v154 = vld [vmem:[#allocation4 + $0x3c] sm:$0xf]
    %v155 = vld [vmem:[#allocation6] sm:$0x1]
    %v157 = vperm.slane %v155, 0
    %v175 = vunpack.c.l.b16 %v139
    %v176 = vunpack.c.l.b16 %v140
    %v177 = vunpack.c.l.b16 %v141
    %v178 = vunpack.c.l.b16 %v142
    %v179 = vunpack.c.l.b16 %v143
    %v180 = vunpack.c.l.b16 %v144
    %v181 = vunpack.c.l.b16 %v145
    %v182 = vunpack.c.l.b16 %v146
    %v183 = vunpack.c.l.b16 %v147
    %v184 = vunpack.c.l.b16 %v148
    %v185 = vunpack.c.l.b16 %v149
    %v186 = vunpack.c.l.b16 %v150
    %v187 = vunpack.c.l.b16 %v151
    %v188 = vunpack.c.l.b16 %v152
    %v189 = vunpack.c.l.b16 %v153
    %v190 = vunpack.c.l.b16 %v154
    %v191 = vpack.c.b16 %v176, %v175
    %v192 = vpack.c.b16 %v178, %v177
    %v193 = vpack.c.b16 %v180, %v179
    %v194 = vpack.c.b16 %v182, %v181
    %v195 = vpack.c.b16 %v184, %v183
    %v196 = vpack.c.b16 %v186, %v185
    %v197 = vpack.c.b16 %v188, %v187
    %v198 = vpack.c.b16 %v190, %v189
    %207 = vmatpush.bf16.msra.mxu0 %v198
    %208 = vmatpush.bf16.msra.mxu0 %v197
    %209 = vmatpush.bf16.msra.mxu0 %v196
    %210 = vmatpush.bf16.msra.mxu0 %v195
    %211 = vmatpush.bf16.msra.mxu0 %v194
    %212 = vmatpush.bf16.msra.mxu0 %v193
    %213 = vmatpush.bf16.msra.mxu0 %v192
    %214 = vmatpush.bf16.msra.mxu0 %v191
    %215 = vmatmul.bf16.gmra.mxu0 %v138
    %v216 = vpop.f32.mrf.mxu0
    %v217 = vadd.f32 %v157, %v216
    %v218 = vpop.f32.mrf.mxu0
    %219 = vdwg.mxu0
    %v220 = vmax.f32 %v217, 0.0
    %v221 = vpack.c.bf16 %v220, %v220
    %v222 = vld [vmem:[#allocation7] sm:$0xf]
    %v223 = vld [vmem:[#allocation7 + $0x4] sm:$0xf]
    %v224 = vld [vmem:[#allocation7 + $0x8] sm:$0xf]
    %v225 = vld [vmem:[#allocation7 + $0xc] sm:$0xf]
    %v226 = vld [vmem:[#allocation7 + $0x10] sm:$0xf]
    %v227 = vld [vmem:[#allocation7 + $0x14] sm:$0xf]
    %v228 = vld [vmem:[#allocation7 + $0x18] sm:$0xf]
    %v229 = vld [vmem:[#allocation7 + $0x1c] sm:$0xf]
    %v230 = vld [vmem:[#allocation7 + $0x20] sm:$0xf]
    %v231 = vld [vmem:[#allocation7 + $0x24] sm:$0xf]
    %v232 = vld [vmem:[#allocation7 + $0x28] sm:$0xf]
    %v233 = vld [vmem:[#allocation7 + $0x2c] sm:$0xf]
    %v234 = vld [vmem:[#allocation7 + $0x30] sm:$0xf]
    %v235 = vld [vmem:[#allocation7 + $0x34] sm:$0xf]
    %v236 = vld [vmem:[#allocation7 + $0x38] sm:$0xf]
    %v237 = vld [vmem:[#allocation7 + $0x3c] sm:$0xf]
    %v238 = vld [vmem:[#allocation9] sm:$0x1]
    %v240 = vperm.slane %v238, 0
    %v258 = vunpack.c.l.b16 %v222
    %v259 = vunpack.c.l.b16 %v223
    %v260 = vunpack.c.l.b16 %v224
    %v261 = vunpack.c.l.b16 %v225
    %v262 = vunpack.c.l.b16 %v226
    %v263 = vunpack.c.l.b16 %v227
    %v264 = vunpack.c.l.b16 %v228
    %v265 = vunpack.c.l.b16 %v229
    %v266 = vunpack.c.l.b16 %v230
    %v267 = vunpack.c.l.b16 %v231
    %v268 = vunpack.c.l.b16 %v232
    %v269 = vunpack.c.l.b16 %v233
    %v270 = vunpack.c.l.b16 %v234
    %v271 = vunpack.c.l.b16 %v235
    %v272 = vunpack.c.l.b16 %v236
    %v273 = vunpack.c.l.b16 %v237
    %v274 = vpack.c.b16 %v259, %v258
    %v275 = vpack.c.b16 %v261, %v260
    %v276 = vpack.c.b16 %v263, %v262
    %v277 = vpack.c.b16 %v265, %v264
    %v278 = vpack.c.b16 %v267, %v266
    %v279 = vpack.c.b16 %v269, %v268
    %v280 = vpack.c.b16 %v271, %v270
    %v281 = vpack.c.b16 %v273, %v272
    %290 = vmatpush.bf16.msra.mxu0 %v281
    %291 = vmatpush.bf16.msra.mxu0 %v280
    %292 = vmatpush.bf16.msra.mxu0 %v279
    %293 = vmatpush.bf16.msra.mxu0 %v278
    %294 = vmatpush.bf16.msra.mxu0 %v277
    %295 = vmatpush.bf16.msra.mxu0 %v276
    %296 = vmatpush.bf16.msra.mxu0 %v275
    %297 = vmatpush.bf16.msra.mxu0 %v274
    %298 = vmatmul.bf16.gmra.mxu0 %v221
    %v299 = vpop.f32.mrf.mxu0
    %v300 = vadd.f32 %v240, %v299
    %v301 = vpop.f32.mrf.mxu0
    %302 = vdwg.mxu0
    %v303 = vmax.f32 %v300, 0.0
    %304 = vst [vmem:[%s7] sm:$0xff] %v303
    // Predicated region
    $region50: #{mlp_forward.1} parent=1 // pred_check
      _
    $region51: #{mlp_forward.1} parent=1 // pred_check_branch
      %306 = sbr.rel (0) target = $region53
    $region52: #{mlp_forward.1} parent=1 // pred_region
      _
    $region53: #{mlp_forward.1} parent=1 // pred_fallthru
      _
    // Predicated region
    $region54: #{mlp_forward.1} parent=1 // pred_check
      _
    $region55: #{mlp_forward.1} parent=1 // pred_check_branch
      %308 = sbr.rel (0) target = $region57
    $region56: #{mlp_forward.1} parent=1 // pred_region
      _
    $region57: #{mlp_forward.1} parent=1 // pred_fallthru
      _
    %309 = vsyncpa [#allocation3], 1
    %310 = vsyncpa [#allocation5], 1
    %311 = vsyncpa [#allocation8], 1

</llo_original>
